<compile_context>
chip_gen: v6e
topology: v6e:2x2x1
jax: 0.10.0
libtpu: 0.0.40
codegen_flags: <defaults>
</compile_context>

<pallas_src>
import math
from typing import NamedTuple, Optional

import jax
import jax.numpy as jnp
from jax.experimental import pallas as pl
from jax.experimental.pallas import tpu as pltpu


# --------------------------------------------------------------------------- #
# Kernels
# --------------------------------------------------------------------------- #
def _lora_kernel(x_ref, wt_ref, xa_ref, bt_ref, o_ref, acc_ref):
    # x_ref : (tm, tk)   activation tile
    # wt_ref: (tk, tn)   pre-transposed base weight tile (W^T)
    # xa_ref: (tm, r)    precomputed x @ A^T rows for this M tile (resident over j, k)
    # bt_ref: (r,  tn)   pre-transposed, pre-scaled lora_B tile (scaling * B^T)
    # acc_ref: (tm, tn)  f32 accumulator
    k = pl.program_id(2)

    @pl.when(k == 0)
    def _():
        # Seed the accumulator with the LoRA epilogue: one tiny (tm,r)x(r,tn)
        # MXU pass per (i, j) tile -- no per-K-step LoRA work.
        acc_ref[...] = jnp.dot(xa_ref[...], bt_ref[...],
                               preferred_element_type=jnp.float32)

    acc_ref[...] += jnp.dot(x_ref[...], wt_ref[...],
                            preferred_element_type=jnp.float32)

    @pl.when(k == pl.num_programs(2) - 1)
    def _():
        o_ref[...] = acc_ref[...].astype(o_ref.dtype)


def _matmul_kernel(x_ref, wt_ref, o_ref, acc_ref):
    # Plain K-streamed matmul for the merged-weight serving path.
    k = pl.program_id(2)

    @pl.when(k == 0)
    def _():
        acc_ref[...] = jnp.zeros_like(acc_ref)

    acc_ref[...] += jnp.dot(x_ref[...], wt_ref[...],
                            preferred_element_type=jnp.float32)

    @pl.when(k == pl.num_programs(2) - 1)
    def _():
        o_ref[...] = acc_ref[...].astype(o_ref.dtype)


# --------------------------------------------------------------------------- #
# Helpers
# --------------------------------------------------------------------------- #
def _round_up(x, m):
    return ((x + m - 1) // m) * m


def _sublane(dtype):
    # Min sublane multiple for the second-minor dim: 8 for 4-byte, 16 for
    # 2-byte (bf16 packs 2 rows / sublane), 32 for 1-byte dtypes.
    return {4: 8, 2: 16, 1: 32}.get(jnp.dtype(dtype).itemsize, 8)


def _pick_tile_128(dim_pad, max_tile):
    """Largest multiple of 128 that is <= max_tile and divides dim_pad (itself a 128 multiple)."""
    t = min(max_tile, dim_pad)
    t = max((t // 128) * 128, 128)
    while dim_pad % t != 0:
        t -= 128
    return t


def _vmem_capacity_bytes():
    try:
        return int(pltpu.get_tpu_info().vmem_capacity_bytes)
    except Exception:
        return 64 << 20  # conservative (v7x per-TC VMEM); safe on all generations


class PreparedLoRA(NamedTuple):
    wt: jax.Array                # [K_pad, N_pad]  W^T (or merged W'^T)
    at: Optional[jax.Array]      # [K_pad, r]      A^T          (None if merged)
    bt: Optional[jax.Array]      # [r, N_pad]      scaling*B^T  (None if merged)
    in_features: int
    out_features: int


def prepare_lora_weights(base_weight, lora_A, lora_B, scaling, *, merge=False):
    """One-time weight prep (do this at parameter-load time, NOT per forward).

    Transposes to MXU-friendly layouts, folds the LoRA scaling into B^T and
    zero-pads the N / K dims to multiples of 128 so the kernel's tiles are
    lane-dense.  With merge=True, returns a single merged weight
    W'^T = W^T + A^T @ (scaling * B^T) for static-adapter serving.
    """
    out_features, in_features = base_weight.shape
    r = lora_A.shape[0]
    assert lora_A.shape == (r, in_features)
    assert lora_B.shape == (out_features, r)

    k_pad = _round_up(in_features, 128)
    n_pad = _round_up(out_features, 128)
    hp = jax.lax.Precision.HIGHEST

    wt = base_weight.T                                         # [K, N]
    at = lora_A.T                                              # [K, r]
    bt = (lora_B * jnp.asarray(scaling, lora_B.dtype)).T       # [r, N]

    if merge:
        delta = jnp.dot(at.astype(jnp.float32), bt.astype(jnp.float32),
                        precision=hp)
        wt = (wt.astype(jnp.float32) + delta).astype(base_weight.dtype)
        wt = jnp.pad(wt, ((0, k_pad - in_features), (0, n_pad - out_features)))
        return PreparedLoRA(wt, None, None, in_features, out_features)

    wt = jnp.pad(wt, ((0, k_pad - in_features), (0, n_pad - out_features)))
    at = jnp.pad(at, ((0, k_pad - in_features), (0, 0)))
    bt = jnp.pad(bt, ((0, 0), (0, n_pad - out_features)))
    return PreparedLoRA(wt, at, bt, in_features, out_features)


# --------------------------------------------------------------------------- #
# Forward
# --------------------------------------------------------------------------- #
def lora_linear_prepared(x, prep: PreparedLoRA, *,
                         tile_m=512, tile_n=512, tile_k=1024):
    """x: [..., in_features] -> [..., out_features] using prepared weights."""
    in_features, out_features = prep.in_features, prep.out_features
    k_pad, n_pad = prep.wt.shape
    assert x.shape[-1] == in_features

    lead_shape = x.shape[:-1]
    x2d = x.reshape(-1, in_features)
    m = x2d.shape[0]

    # ---- tile selection (dtype-aware M rounding, 128-multiple N/K tiles) ----
    sub = _sublane(x.dtype)
    tm = _round_up(min(tile_m, _round_up(m, sub)), sub)
    m_pad = _round_up(m, tm)
    tn = _pick_tile_128(n_pad, tile_n)
    tk = _pick_tile_128(k_pad, tile_k)
    nm, nn, nk = m_pad // tm, n_pad // tn, k_pad // tk

    pad_m, pad_k = m_pad - m, k_pad - in_features
    if pad_m or pad_k:
        x2d = jnp.pad(x2d, ((0, pad_m), (0, pad_k)))

    itemsize = jnp.dtype(x.dtype).itemsize
    w_itemsize = jnp.dtype(prep.wt.dtype).itemsize
    merged = prep.at is None
    r = 0 if merged else prep.at.shape[1]

    # Roofline hints.
    flops = 2 * m_pad * k_pad * n_pad + (0 if merged else 2 * m_pad * r * n_pad)
    bytes_accessed = (itemsize * (m_pad * k_pad + m_pad * n_pad)
                      + w_itemsize * (k_pad * n_pad + r * n_pad)
                      + 4 * m_pad * r)

    # Double-buffered per-tile footprint + f32 accumulator, with headroom,
    # capped per hardware generation.
    buf = (itemsize * tm * tk + w_itemsize * tk * tn + itemsize * tm * tn
           + itemsize * tm * max(r, 128) + w_itemsize * max(r, 32) * tn)
    vmem_bytes = 2 * buf + 4 * tm * tn
    vmem_limit = min(max(2 * vmem_bytes + (4 << 20), 32 << 20),
                     int(_vmem_capacity_bytes() * 0.9))

    compiler_params = pltpu.CompilerParams(
        dimension_semantics=("parallel", "parallel", "arbitrary"),
        vmem_limit_bytes=vmem_limit)
    cost = pl.CostEstimate(flops=flops, transcendentals=0,
                           bytes_accessed=bytes_accessed)

    if merged:
        y2d = pl.pallas_call(
            _matmul_kernel,
            out_shape=jax.ShapeDtypeStruct((m_pad, n_pad), x.dtype),
            grid_spec=pltpu.PrefetchScalarGridSpec(
                num_scalar_prefetch=0,
                grid=(nm, nn, nk),
                in_specs=[
                    pl.BlockSpec((tm, tk), lambda i, j, k: (i, k)),   # x
                    pl.BlockSpec((tk, tn), lambda i, j, k: (k, j)),   # merged W^T
                ],
                out_specs=pl.BlockSpec((tm, tn), lambda i, j, k: (i, j)),
                scratch_shapes=[pltpu.VMEM((tm, tn), jnp.float32)],
            ),
            compiler_params=compiler_params,
            cost_estimate=cost,
        )(x2d, prep.wt)
    else:
        # Tiny low-rank projection, hoisted out of the kernel's hot loop:
        # [m_pad, K] @ [K, r] -> [m_pad, r].
        xa = jnp.dot(x2d, prep.at,
                     precision=jax.lax.Precision.HIGHEST).astype(x.dtype)

        y2d = pl.pallas_call(
            _lora_kernel,
            out_shape=jax.ShapeDtypeStruct((m_pad, n_pad), x.dtype),
            grid_spec=pltpu.PrefetchScalarGridSpec(
                num_scalar_prefetch=0,
                grid=(nm, nn, nk),
                in_specs=[
                    pl.BlockSpec((tm, tk), lambda i, j, k: (i, k)),   # x
                    pl.BlockSpec((tk, tn), lambda i, j, k: (k, j)),   # W^T
                    pl.BlockSpec((tm, r), lambda i, j, k: (i, 0)),    # xa (resident over j,k)
                    pl.BlockSpec((r, tn), lambda i, j, k: (0, j)),    # scaled B^T
                ],
                out_specs=pl.BlockSpec((tm, tn), lambda i, j, k: (i, j)),
                scratch_shapes=[pltpu.VMEM((tm, tn), jnp.float32)],
            ),
            compiler_params=compiler_params,
            cost_estimate=cost,
        )(x2d, prep.wt, xa, prep.bt)

    y2d = y2d[:m, :out_features]
    return y2d.reshape(*lead_shape, out_features)


def lora_linear(x, base_weight, lora_A, lora_B, scaling, **tile_kwargs):
    """Convenience wrapper. For hot-path use, call prepare_lora_weights() once
    at load time and reuse the PreparedLoRA (avoids re-transposing / re-padding
    the weights in HBM every forward)."""
    prep = prepare_lora_weights(base_weight, lora_A, lora_B, scaling)
    return lora_linear_prepared(x, prep, **tile_kwargs)


# --------------------------------------------------------------------------- #
# Self-test
# --------------------------------------------------------------------------- #
if __name__ == "__main__":
    # Config mirrors LoRAConfig: r=8, alpha=16 -> scaling = 2.0
    r = 8
    alpha = 16.0
    scaling = alpha / r

    # Small shapes chosen so the grid exercises M-padding, N-tiling and
    # K-accumulation (grid = (2, 2, 2) with the tile overrides below).
    batch, seq, in_features, out_features = 2, 20, 256, 256

    key = jax.random.PRNGKey(0)
    kx, kw, ka, kb = jax.random.split(key, 4)

    x = jax.random.normal(kx, (batch, seq, in_features), dtype=jnp.float32)
    base_weight = jax.random.normal(kw, (out_features, in_features),
                                    dtype=jnp.float32) * 0.1

    # kaiming_uniform_(a=sqrt(5)) on lora_A -> U(-bound, bound), bound = 1/sqrt(fan_in)
    bound_a = 1.0 / math.sqrt(in_features)
    lora_A = jax.random.uniform(ka, (r, in_features), dtype=jnp.float32,
                                minval=-bound_a, maxval=bound_a)
    # Module inits lora_B to zeros; use small random values so the LoRA path
    # is actually exercised numerically.
    lora_B = jax.random.uniform(kb, (out_features, r), dtype=jnp.float32,
                                minval=-0.1, maxval=0.1)

    # --- unmerged path (separate LoRA epilogue, hot-path layout prep hoisted) ---
    prep = prepare_lora_weights(base_weight, lora_A, lora_B, scaling)
    y = lora_linear_prepared(x, prep, tile_m=32, tile_n=128, tile_k=128)
    y = jax.block_until_ready(y)

    # --- merged-weight serving path ---
    prep_merged = prepare_lora_weights(base_weight, lora_A, lora_B, scaling,
                                       merge=True)
    y_merged = lora_linear_prepared(x, prep_merged,
                                    tile_m=32, tile_n=128, tile_k=128)
    y_merged = jax.block_until_ready(y_merged)

    # Reference in plain JAX (dropout = identity in eval mode).
    hp = jax.lax.Precision.HIGHEST
    base_ref = jnp.einsum("bsi,oi->bso", x, base_weight, precision=hp)
    xa_ref = jnp.einsum("bsi,ri->bsr", x, lora_A, precision=hp)
    lora_ref = jnp.einsum("bsr,or->bso", xa_ref, lora_B, precision=hp)
    y_ref = base_ref + lora_ref * scaling

    assert y.shape == (batch, seq, out_features)
    assert jnp.allclose(y, y_ref, atol=2e-4, rtol=2e-4), "unmerged path mismatch"
    assert jnp.allclose(y_merged, y_ref, atol=3e-4, rtol=3e-4), "merged path mismatch"

    print("KERNEL_OK")
</pallas_src>

<mosaic_0001>
module attributes {stable_mosaic.version = 11 : i64} {
  func.func @_lora_kernel(%arg0: i32, %arg1: i32, %arg2: i32, %arg3: memref<32x128xf32, #tpu.memory_space<vmem>>, %arg4: memref<128x128xf32, #tpu.memory_space<vmem>>, %arg5: memref<32x8xf32, #tpu.memory_space<vmem>>, %arg6: memref<8x128xf32, #tpu.memory_space<vmem>>, %arg7: memref<32x128xf32, #tpu.memory_space<vmem>>, %arg8: memref<32x128xf32, #tpu.memory_space<vmem>>) attributes {dimension_semantics = [#tpu.dimension_semantics<parallel>, #tpu.dimension_semantics<parallel>, #tpu.dimension_semantics<arbitrary>], iteration_bounds = array<i64: 2, 2, 2>, scalar_prefetch = 0 : i64, scratch_operands = 1 : i64, tpu.core_type = #tpu.core_type<tc>, window_params = [{transform_indices = @transform_0, window_bounds = array<i64: 32, 128>}, {transform_indices = @transform_1, window_bounds = array<i64: 128, 128>}, {transform_indices = @transform_2, window_bounds = array<i64: 32, 8>}, {transform_indices = @transform_3, window_bounds = array<i64: 8, 128>}, {transform_indices = @transform_4, window_bounds = array<i64: 32, 128>}]} {
    %c0_i32 = arith.constant 0 : i32
    %0 = arith.cmpi eq, %arg2, %c0_i32 : i32
    %1 = arith.extui %0 : i1 to i32
    %c0_i32_0 = arith.constant 0 : i32
    %2 = arith.cmpi ne, %1, %c0_i32_0 : i32
    scf.if %2 {
      %c0_9 = arith.constant 0 : index
      %c0_10 = arith.constant 0 : index
      %12 = vector.load %arg5[%c0_9, %c0_10] : memref<32x8xf32, #tpu.memory_space<vmem>>, vector<32x8xf32>
      %c0_11 = arith.constant 0 : index
      %c0_12 = arith.constant 0 : index
      %13 = vector.load %arg6[%c0_11, %c0_12] : memref<8x128xf32, #tpu.memory_space<vmem>>, vector<8x128xf32>
      %cst_13 = arith.constant dense<0.000000e+00> : vector<32x128xf32>
      %14 = tpu.matmul %12, %13, %cst_13 {dimension_numbers = #tpu.dot_dimension_numbers<[1], [0], [0], [1], [0, 0, 1, 1], [], []>} : vector<32x8xf32>, vector<8x128xf32>, vector<32x128xf32> -> vector<32x128xf32>
      %c0_14 = arith.constant 0 : index
      %c0_15 = arith.constant 0 : index
      %15 = vector.load %arg8[%c0_14, %c0_15] : memref<32x128xf32, #tpu.memory_space<vmem>>, vector<32x128xf32>
      tpu.vector_store %arg8[%c0_14, %c0_15], %14 {strides = array<i32>} : memref<32x128xf32, #tpu.memory_space<vmem>>, vector<32x128xf32>,
    } else {
    }
    %c0 = arith.constant 0 : index
    %c0_1 = arith.constant 0 : index
    %3 = vector.load %arg8[%c0, %c0_1] : memref<32x128xf32, #tpu.memory_space<vmem>>, vector<32x128xf32>
    %c0_2 = arith.constant 0 : index
    %c0_3 = arith.constant 0 : index
    %4 = vector.load %arg3[%c0_2, %c0_3] : memref<32x128xf32, #tpu.memory_space<vmem>>, vector<32x128xf32>
    %c0_4 = arith.constant 0 : index
    %c0_5 = arith.constant 0 : index
    %5 = vector.load %arg4[%c0_4, %c0_5] : memref<128x128xf32, #tpu.memory_space<vmem>>, vector<128x128xf32>
    %cst = arith.constant dense<0.000000e+00> : vector<32x128xf32>
    %6 = tpu.matmul %4, %5, %cst {dimension_numbers = #tpu.dot_dimension_numbers<[1], [0], [0], [1], [0, 0, 1, 1], [], []>} : vector<32x128xf32>, vector<128x128xf32>, vector<32x128xf32> -> vector<32x128xf32>
    %7 = arith.addf %3, %6 : vector<32x128xf32>
    %c0_6 = arith.constant 0 : index
    %c0_7 = arith.constant 0 : index
    %8 = vector.load %arg8[%c0_6, %c0_7] : memref<32x128xf32, #tpu.memory_space<vmem>>, vector<32x128xf32>
    tpu.vector_store %arg8[%c0_6, %c0_7], %7 {strides = array<i32>} : memref<32x128xf32, #tpu.memory_space<vmem>>, vector<32x128xf32>,
    %c1_i32 = arith.constant 1 : i32
    %9 = arith.cmpi eq, %arg2, %c1_i32 : i32
    %10 = arith.extui %9 : i1 to i32
    %c0_i32_8 = arith.constant 0 : i32
    %11 = arith.cmpi ne, %10, %c0_i32_8 : i32
    scf.if %11 {
      %c0_9 = arith.constant 0 : index
      %c0_10 = arith.constant 0 : index
      %12 = vector.load %arg8[%c0_9, %c0_10] : memref<32x128xf32, #tpu.memory_space<vmem>>, vector<32x128xf32>
      %c0_11 = arith.constant 0 : index
      %c0_12 = arith.constant 0 : index
      %13 = vector.load %arg7[%c0_11, %c0_12] : memref<32x128xf32, #tpu.memory_space<vmem>>, vector<32x128xf32>
      tpu.vector_store %arg7[%c0_11, %c0_12], %12 {strides = array<i32>} : memref<32x128xf32, #tpu.memory_space<vmem>>, vector<32x128xf32>,
    } else {
    }
    return
  }
  func.func @transform_0(%arg0: i32, %arg1: i32, %arg2: i32) -> (i32, i32) {
    %c0_i32 = arith.constant 0 : i32
    return %arg0, %arg2 : i32, i32
  }
  func.func @transform_1(%arg0: i32, %arg1: i32, %arg2: i32) -> (i32, i32) {
    %c0_i32 = arith.constant 0 : i32
    return %arg2, %arg1 : i32, i32
  }
  func.func @transform_2(%arg0: i32, %arg1: i32, %arg2: i32) -> (i32, i32) {
    %c0_i32 = arith.constant 0 : i32
    %c0_i32_0 = arith.constant 0 : i32
    return %arg0, %c0_i32 : i32, i32
  }
  func.func @transform_3(%arg0: i32, %arg1: i32, %arg2: i32) -> (i32, i32) {
    %c0_i32 = arith.constant 0 : i32
    %c0_i32_0 = arith.constant 0 : i32
    return %c0_i32, %arg1 : i32, i32
  }
  func.func @transform_4(%arg0: i32, %arg1: i32, %arg2: i32) -> (i32, i32) {
    %c0_i32 = arith.constant 0 : i32
    return %arg0, %arg1 : i32, i32
  }
}

</mosaic_0001>

<llo_original>
// kernel: tpu_custom_call.1
$region0: #{tpu_custom_call.1}
  #allocation0 [shape = 'u32[]', space=smem, size = 0x4, offset = 0x4, fixed_abs, tag = 'smem constant byte address 0x4 - core index']
  #allocation1 [shape = 'u32[144,128]{1,0:T(1,128)}', space=vmem, size = 0x12000, scoped, tag = 'internal scratch']
  #allocation2 [shape = 'f32[32,128]{1,0:T(8,128)}', space=vmem, size = 0x4000, scoped, tag = 'scratch operand']
  %s0 = inlined_call_operand.hbm [shape: f32[64,256], index: 0, kind: input, shape index: {}]
  %s1 = inlined_call_operand.hbm [shape: f32[256,256], index: 1, kind: input, shape index: {}]
  %s2 = inlined_call_operand.vmem [shape: f32[64,8], index: 2, kind: input, shape index: {}]
  %s3 = inlined_call_operand.vmem [shape: f32[8,256], index: 3, kind: input, shape index: {}]
  %s4 = inlined_call_operand.hbm [shape: f32[64,256], index: 4, kind: output, shape index: {}]
  %s5 = sld [smem:[#allocation0]]
  $region65: #{tpu_custom_call.1} parent=0
    _
  %s7 = ssub.s32 1, %s5
  %s8 = scalar_select 0, %s7, %s5
  $region1: #{tpu_custom_call.1} parent=0
    #allocation3 [shape = 'u8[32768]{0}', space=vmem, size = 0x8000, scoped, tag = 'input window, operand 0']
    #allocation4 [shape = 's32[2]{0}', space=sflag, size = 0x8, scoped, tag = 'scoped memory for tpu_custom_call.1']
    #allocation5 [shape = 's32[2]{0}', space=sflag, size = 0x8, scoped, tag = 'scoped memory for tpu_custom_call.1']
    #allocation6 [shape = 'u8[131072]{0}', space=vmem, size = 0x20000, scoped, tag = 'input window, operand 1']
    #allocation7 [shape = 's32[2]{0}', space=sflag, size = 0x8, scoped, tag = 'scoped memory for tpu_custom_call.1']
    #allocation8 [shape = 'u8[32768]{0}', space=vmem, size = 0x8000, scoped, tag = 'output window, operand 0']
    %9 = vsyncpa [#allocation4], 0
    %s10 = scalar_lea.sflag [#allocation4], 1
    %11 = vsyncpa %s10, 0
    %12 = vsyncpa [#allocation7], 0
    %s13 = scalar_lea.sflag [#allocation7], 1
    %14 = vsyncpa %s13, 0
    %15 = vsyncpa [#allocation5], 0
    %s16 = scalar_lea.sflag [#allocation5], 1
    %17 = vsyncpa %s16, 0
    loop: start=0, step=1, limit=10
    $region2: #{tpu_custom_call.1} parent=1 // loop_pre_header
      _
    $region3: #{tpu_custom_call.1} parent=1 // loop_header
      %s19 = sphi 0, %s23
      %p20 = scmp.ge.s32.totalorder %s19, 10
      %s26 = sphi 0, %s45
      %s27 = sphi 0, %s41
      %s28 = sphi 0, %s37
      %s29 = sphi 0, %s26
      %s30 = sphi 0, %s27
      %s31 = sphi 0, %s28
      %s32 = sphi 0, %s29
      %s33 = sphi 0, %s30
      %s34 = sphi 0, %s31
      %s50 = sphi 0, %s52
      %s53 = sphi 0, %s50
      %s54 = sphi 0, %s53
      %s70 = sphi 0, %s54
      %s78 = sphi 0, %s80
      %s81 = sphi 0, %s78
      %s82 = sphi 0, %s81
      %s98 = sphi 0, %s82
      %s104 = sphi 0, %s106
      %s107 = sphi 0, %s104
      %s108 = sphi 0, %s107
      %s124 = sphi 0, %s108
      %s130 = sphi 0, %s132
      %s133 = sphi 0, %s130
      %s134 = sphi 0, %s133
      %s150 = sphi 0, %s134
      %s158 = sphi 0, %s160
      %s161 = sphi 0, %s158
      %s162 = sphi 0, %s161
      %s178 = sphi 0, %s162
    $region4: #{tpu_custom_call.1} parent=1 // loop_header_branch
      %22 = sbr.rel (%p20) target = $region8
    $region5: #{tpu_custom_call.1} parent=1 // loop_body
      %s24 = ssub.s32 %s19, 1
      %s25 = ssub.s32 %s19, 2
      %s35 = sadd.s32 1, %s28
      %p36 = scmp.ge.s32.totalorder %s35, 2
      %s37 = scalar_select %p36, 0, %s35
      %s38 = sadd.s32 1, %s27
      %s39 = scalar_select %p36, %s38, %s27
      %p40 = scmp.ge.s32.totalorder %s39, 2
      %s41 = scalar_select %p40, 0, %s39
      %s42 = sadd.s32 1, %s26
      %s43 = scalar_select %p40, %s42, %s26
      %p44 = scmp.ge.s32.totalorder %s43, 2
      %s45 = scalar_select %p44, 0, %s43
      %s46 = ssub.s32 %s26, %s45
      %s47 = ssub.s32 %s28, %s37
      %s48 = sor.u32 %s46, %s47
      %p49 = scmp.eq.s32.totalorder %s48, 0
      %s51 = sadd.s32 %s50, 1
      %s52 = scalar_select %p49, %s50, %s51
      %p55 = pneg %p49
      %p56 = scmp.eq.s32.totalorder %s19, 7
      %p57 = por %p55, %p56
      %p58 = scmp.ne.s32.totalorder %s50, %s53
      %p59 = scmp.eq.s32.totalorder %s19, 0
      %p60 = por %p58, %p59
      %p61 = scmp.ne.s32.totalorder %s50, %s53
      %p62 = scmp.eq.s32.totalorder %s24, 7
      %p63 = por %p61, %p62
      %p64 = scmp.ne.s32.totalorder %s53, %s54
      %p65 = scmp.eq.s32.totalorder %s24, 0
      %p66 = por %p64, %p65
      %p67 = scmp.ne.s32.totalorder %s53, %s54
      %p68 = scmp.eq.s32.totalorder %s25, 7
      %p69 = por %p67, %p68
      %p71 = scmp.ne.s32.totalorder %s54, %s70
      %p72 = scmp.eq.s32.totalorder %s25, 0
      %p73 = por %p71, %p72
      %s74 = ssub.s32 %s28, %s37
      %s75 = ssub.s32 %s27, %s41
      %s76 = sor.u32 %s74, %s75
      %p77 = scmp.eq.s32.totalorder %s76, 0
      %s79 = sadd.s32 %s78, 1
      %s80 = scalar_select %p77, %s78, %s79
      %p83 = pneg %p77
      %p84 = scmp.eq.s32.totalorder %s19, 7
      %p85 = por %p83, %p84
      %p86 = scmp.ne.s32.totalorder %s78, %s81
      %p87 = scmp.eq.s32.totalorder %s19, 0
      %p88 = por %p86, %p87
      %p89 = scmp.ne.s32.totalorder %s78, %s81
      %p90 = scmp.eq.s32.totalorder %s24, 7
      %p91 = por %p89, %p90
      %p92 = scmp.ne.s32.totalorder %s81, %s82
      %p93 = scmp.eq.s32.totalorder %s24, 0
      %p94 = por %p92, %p93
      %p95 = scmp.ne.s32.totalorder %s81, %s82
      %p96 = scmp.eq.s32.totalorder %s25, 7
      %p97 = por %p95, %p96
      %p99 = scmp.ne.s32.totalorder %s82, %s98
      %p100 = scmp.eq.s32.totalorder %s25, 0
      %p101 = por %p99, %p100
      %s102 = ssub.s32 %s26, %s45
      %p103 = scmp.eq.s32.totalorder %s102, 0
      %s105 = sadd.s32 %s104, 1
      %s106 = scalar_select %p103, %s104, %s105
      %p109 = pneg %p103
      %p110 = scmp.eq.s32.totalorder %s19, 7
      %p111 = por %p109, %p110
      %p112 = scmp.ne.s32.totalorder %s104, %s107
      %p113 = scmp.eq.s32.totalorder %s19, 0
      %p114 = por %p112, %p113
      %p115 = scmp.ne.s32.totalorder %s104, %s107
      %p116 = scmp.eq.s32.totalorder %s24, 7
      %p117 = por %p115, %p116
      %p118 = scmp.ne.s32.totalorder %s107, %s108
      %p119 = scmp.eq.s32.totalorder %s24, 0
      %p120 = por %p118, %p119
      %p121 = scmp.ne.s32.totalorder %s107, %s108
      %p122 = scmp.eq.s32.totalorder %s25, 7
      %p123 = por %p121, %p122
      %p125 = scmp.ne.s32.totalorder %s108, %s124
      %p126 = scmp.eq.s32.totalorder %s25, 0
      %p127 = por %p125, %p126
      %s128 = ssub.s32 %s27, %s41
      %p129 = scmp.eq.s32.totalorder %s128, 0
      %s131 = sadd.s32 %s130, 1
      %s132 = scalar_select %p129, %s130, %s131
      %p135 = pneg %p129
      %p136 = scmp.eq.s32.totalorder %s19, 7
      %p137 = por %p135, %p136
      %p138 = scmp.ne.s32.totalorder %s130, %s133
      %p139 = scmp.eq.s32.totalorder %s19, 0
      %p140 = por %p138, %p139
      %p141 = scmp.ne.s32.totalorder %s130, %s133
      %p142 = scmp.eq.s32.totalorder %s24, 7
      %p143 = por %p141, %p142
      %p144 = scmp.ne.s32.totalorder %s133, %s134
      %p145 = scmp.eq.s32.totalorder %s24, 0
      %p146 = por %p144, %p145
      %p147 = scmp.ne.s32.totalorder %s133, %s134
      %p148 = scmp.eq.s32.totalorder %s25, 7
      %p149 = por %p147, %p148
      %p151 = scmp.ne.s32.totalorder %s134, %s150
      %p152 = scmp.eq.s32.totalorder %s25, 0
      %p153 = por %p151, %p152
      %s154 = ssub.s32 %s26, %s45
      %s155 = ssub.s32 %s27, %s41
      %s156 = sor.u32 %s154, %s155
      %p157 = scmp.eq.s32.totalorder %s156, 0
      %s159 = sadd.s32 %s158, 1
      %s160 = scalar_select %p157, %s158, %s159
      %p163 = pneg %p157
      %p164 = scmp.eq.s32.totalorder %s19, 7
      %p165 = por %p163, %p164
      %p166 = scmp.ne.s32.totalorder %s158, %s161
      %p167 = scmp.eq.s32.totalorder %s19, 0
      %p168 = por %p166, %p167
      %p169 = scmp.ne.s32.totalorder %s158, %s161
      %p170 = scmp.eq.s32.totalorder %s24, 7
      %p171 = por %p169, %p170
      %p172 = scmp.ne.s32.totalorder %s161, %s162
      %p173 = scmp.eq.s32.totalorder %s24, 0
      %p174 = por %p172, %p173
      %p175 = scmp.ne.s32.totalorder %s161, %s162
      %p176 = scmp.eq.s32.totalorder %s25, 7
      %p177 = por %p175, %p176
      %p179 = scmp.ne.s32.totalorder %s162, %s178
      %p180 = scmp.eq.s32.totalorder %s25, 0
      %p181 = por %p179, %p180
      %p182 = scmp.le.s32.totalorder 1, %s19
      %p183 = scmp.lt.s32.totalorder %s19, 9
      %p184 = pnand %p182, %p183
      %p185 = pneg %p184
      // Predicated region
      $region9: #{tpu_custom_call.1} parent=5 // pred_check
        _
      $region10: #{tpu_custom_call.1} parent=5 // pred_check_branch
        %187 = sbr.rel (%p184) target = $region12
      $region11: #{tpu_custom_call.1} parent=5 // pred_region
        %s188 = ssub.s32 %s19, 1
      $region12: #{tpu_custom_call.1} parent=5 // pred_fallthru
        _
      %p189 = scmp.lt.s32.totalorder %s19, 8
      // Predicated region
      $region13: #{tpu_custom_call.1} parent=5 // pred_check
        %p190 = pneg %p189
      $region14: #{tpu_custom_call.1} parent=5 // pred_check_branch
        %192 = sbr.rel (%p190) target = $region16
      $region15: #{tpu_custom_call.1} parent=5 // pred_region
        // Predicated region
        $region17: #{tpu_custom_call.1} parent=15 // pred_check
          %p193 = pneg %p60
        $region18: #{tpu_custom_call.1} parent=15 // pred_check_branch
          %195 = sbr.rel (%p193) target = $region20
        $region19: #{tpu_custom_call.1} parent=15 // pred_region
          %s196 = sand.u32 %s50, 1
          %s197 = scalar_lea.sflag [#allocation4], %s196
          %s198 = sand.u32 %s50, 1
          %s199 = smul.addr %s198, 32
          %s200 = scalar_lea.vmem [#allocation3], %s199
          %s201 = smul.u32 4, %s26
          %s203 = ssub.s32 512, 512
          %204 = vsyncadd %s197, %s203
          %s205 = smul.addr %s201, 2
          %s206 = sadd.s32 %s28, %s205
          %s207 = smul.addr %s206, 128
          %s208 = scalar_lea.hbm %s0, %s207
          %s209 = sshll.u32 %s200, 4
          %s210 = int_to_ptr.vmem [resolvable:$true] %s209
          %215 = dma.hbm_to_vmem [thread:$0]  %s208, 512, %s210, %s197, 256, 128, 8
        $region20: #{tpu_custom_call.1} parent=15 // pred_fallthru
          _
        // Predicated region
        $region21: #{tpu_custom_call.1} parent=15 // pred_check
          %p216 = pneg %p88
        $region22: #{tpu_custom_call.1} parent=15 // pred_check_branch
          %218 = sbr.rel (%p216) target = $region24
        $region23: #{tpu_custom_call.1} parent=15 // pred_region
          %s219 = sand.u32 %s78, 1
          %s220 = scalar_lea.sflag [#allocation7], %s219
          %s221 = sand.u32 %s78, 1
          %s222 = smul.addr %s221, 128
          %s223 = scalar_lea.vmem [#allocation6], %s222
          %s224 = smul.u32 16, %s28
          %s226 = ssub.s32 2048, 2048
          %227 = vsyncadd %s220, %s226
          %s228 = smul.addr %s224, 2
          %s229 = sadd.s32 %s27, %s228
          %s230 = smul.addr %s229, 128
          %s231 = scalar_lea.hbm %s1, %s230
          %s232 = sshll.u32 %s223, 4
          %s233 = int_to_ptr.vmem [resolvable:$true] %s232
          %238 = dma.hbm_to_vmem [thread:$0]  %s231, 2048, %s233, %s220, 256, 128, 8
        $region24: #{tpu_custom_call.1} parent=15 // pred_fallthru
          _
        // Predicated region
        $region25: #{tpu_custom_call.1} parent=15 // pred_check
          %p239 = pneg %p114
        $region26: #{tpu_custom_call.1} parent=15 // pred_check_branch
          %241 = sbr.rel (%p239) target = $region28
        $region27: #{tpu_custom_call.1} parent=15 // pred_region
          %s242 = smul.u32 4, %s26
          %p243 = scmp.lt.s32.totalorder %s242, 7
          %s244 = scalar_select %p243, %s242, 7
          %s245 = smul.addr %s244, 8
          %s246 = scalar_lea.vmem %s2, %s245
          %s247 = smul.u32 4, %s26
        $region28: #{tpu_custom_call.1} parent=15 // pred_fallthru
          _
        // Predicated region
        $region29: #{tpu_custom_call.1} parent=15 // pred_check
          %p248 = pneg %p140
        $region30: #{tpu_custom_call.1} parent=15 // pred_check_branch
          %250 = sbr.rel (%p248) target = $region32
        $region31: #{tpu_custom_call.1} parent=15 // pred_region
          %p251 = scmp.lt.s32.totalorder %s27, 1
          %s252 = scalar_select %p251, %s27, 1
          %s253 = smul.addr %s252, 8
          %s254 = scalar_lea.vmem %s3, %s253
        $region32: #{tpu_custom_call.1} parent=15 // pred_fallthru
          _
      $region16: #{tpu_custom_call.1} parent=5 // pred_fallthru
        _
      %p255 = scmp.le.s32.totalorder 1, %s19
      %p256 = scmp.lt.s32.totalorder %s19, 9
      %p257 = pnand %p255, %p256
      %p258 = pneg %p257
      // Predicated region
      $region33: #{tpu_custom_call.1} parent=5 // pred_check
        _
      $region34: #{tpu_custom_call.1} parent=5 // pred_check_branch
        %260 = sbr.rel (%p257) target = $region36
      $region35: #{tpu_custom_call.1} parent=5 // pred_region
        %s261 = ssub.s32 %s19, 1
        %s262 = sand.u32 %s53, 1
        %s263 = scalar_lea.sflag [#allocation4], %s262
        %s264 = sand.u32 %s53, 1
        %s265 = smul.addr %s264, 32
        %s266 = scalar_lea.vmem [#allocation3], %s265
        // Predicated region
        $region37: #{tpu_custom_call.1} parent=35 // pred_check
          %p267 = pneg %p66
        $region38: #{tpu_custom_call.1} parent=35 // pred_check_branch
          %269 = sbr.rel (%p267) target = $region40
        $region39: #{tpu_custom_call.1} parent=35 // pred_region
          %270 = dma.done %s263, 512
        $region40: #{tpu_custom_call.1} parent=35 // pred_fallthru
          _
        %s271 = sand.u32 %s81, 1
        %s272 = scalar_lea.sflag [#allocation7], %s271
        %s273 = sand.u32 %s81, 1
        %s274 = smul.addr %s273, 128
        %s275 = scalar_lea.vmem [#allocation6], %s274
        // Predicated region
        $region41: #{tpu_custom_call.1} parent=35 // pred_check
          %p276 = pneg %p94
        $region42: #{tpu_custom_call.1} parent=35 // pred_check_branch
          %278 = sbr.rel (%p276) target = $region44
        $region43: #{tpu_custom_call.1} parent=35 // pred_region
          %279 = dma.done %s272, 2048
        $region44: #{tpu_custom_call.1} parent=35 // pred_fallthru
          _
        %s280 = sand.u32 %s53, 1
        %s281 = scalar_lea.sflag [#allocation4], %s280
        %s282 = sand.u32 %s53, 1
        %s283 = smul.addr %s282, 32
        %s284 = scalar_lea.vmem [#allocation3], %s283
        %p285 = pneg %p66
        %p286 = pneg %p63
        %s287 = sand.u32 %s81, 1
        %s288 = scalar_lea.sflag [#allocation7], %s287
        %s289 = sand.u32 %s81, 1
        %s290 = smul.addr %s289, 128
        %s291 = scalar_lea.vmem [#allocation6], %s290
        %p292 = pneg %p94
        %p293 = pneg %p91
        %s294 = smul.u32 4, %s29
        %p295 = scmp.lt.s32.totalorder %s294, 7
        %s296 = scalar_select %p295, %s294, 7
        %s297 = smul.addr %s296, 8
        %s298 = scalar_lea.vmem %s2, %s297
        %p299 = pneg %p120
        %p300 = pneg %p117
        %p301 = scmp.lt.s32.totalorder %s30, 1
        %s302 = scalar_select %p301, %s30, 1
        %s303 = smul.addr %s302, 8
        %s304 = scalar_lea.vmem %s3, %s303
        %p305 = pneg %p146
        %p306 = pneg %p143
        %p307 = pneg %p174
        %p308 = pneg %p171
        %s309 = sand.u32 %s161, 1
        %s310 = scalar_lea.sflag [#allocation5], %s309
        %s311 = sand.u32 %s161, 1
        %s312 = smul.addr %s311, 32
        %s313 = scalar_lea.vmem [#allocation8], %s312
        %s314 = smul.u32 4, %s29
        %s315 = smul.u32 16, %s31
        %s316 = smul.u32 4, %s29
        %p317 = scmp.lt.s32.totalorder %s316, 7
        %s318 = scalar_select %p317, %s316, 7
        %s319 = smul.addr %s318, 8
        %s320 = scalar_lea.vmem %s2, %s319
        %s321 = smul.u32 4, %s29
        %p322 = scmp.lt.s32.totalorder %s30, 1
        %s323 = scalar_select %p322, %s30, 1
        %s324 = smul.addr %s323, 8
        %s325 = scalar_lea.vmem %s3, %s324
        %s326 = smul.u32 4, %s29
        %p327 = scmp.eq.s32.totalorder %s31, 0
        // Predicated region
        $region45: #{tpu_custom_call.1} parent=35 // pred_check
          %p328 = pneg %p327
        $region46: #{tpu_custom_call.1} parent=35 // pred_check_branch
          %330 = sbr.rel (%p328) target = $region48
        $region47: #{tpu_custom_call.1} parent=35 // pred_region
          %v331 = vld [vmem:[%s320] sm:$0xff]
          %v332 = vld [vmem:[%s320 + $0x8] sm:$0xff]
          %v333 = vld [vmem:[%s320 + $0x10] sm:$0xff]
          %v334 = vld [vmem:[%s320 + $0x18] sm:$0xff]
          %v335 = vld [vmem:[%s325] sm:$0xff]
          %vm336 = vcmask 64512
          %v338 = vsel %vm336, %v331, 0
          %v341 = vsel %vm336, %v332, 0
          %v344 = vsel %vm336, %v333, 0
          %v347 = vsel %vm336, %v334, 0
          %349 = vmatprep.subr.mxu0 0.0
          %350 = vmatpush1.msra.mxu0 0.0
          %351 = vmatprep.subr.mxu0 0.0
          %352 = vmatpush1.msra.mxu0 0.0
          %353 = vmatprep.subr.mxu0 0.0
          %354 = vmatpush1.msra.mxu0 0.0
          %355 = vmatprep.subr.mxu0 0.0
          %356 = vmatpush1.msra.mxu0 0.0
          %357 = vmatprep.subr.mxu0 0.0
          %358 = vmatpush1.msra.mxu0 0.0
          %359 = vmatprep.subr.mxu0 0.0
          %360 = vmatpush1.msra.mxu0 0.0
          %361 = vmatprep.subr.mxu0 0.0
          %362 = vmatpush1.msra.mxu0 0.0
          %363 = vmatprep.subr.mxu0 0.0
          %364 = vmatpush1.msra.mxu0 0.0
          %365 = vmatprep.subr.mxu0 0.0
          %366 = vmatpush1.msra.mxu0 0.0
          %367 = vmatprep.subr.mxu0 0.0
          %368 = vmatpush1.msra.mxu0 0.0
          %369 = vmatprep.subr.mxu0 0.0
          %370 = vmatpush1.msra.mxu0 0.0
          %371 = vmatprep.subr.mxu0 0.0
          %372 = vmatpush1.msra.mxu0 0.0
          %373 = vmatprep.subr.mxu0 0.0
          %374 = vmatpush1.msra.mxu0 0.0
          %375 = vmatprep.subr.mxu0 0.0
          %376 = vmatpush1.msra.mxu0 0.0
          %377 = vmatprep.subr.mxu0 0.0
          %378 = vmatpush1.msra.mxu0 0.0
          %379 = vmatprep.subr.mxu0 0.0
          %380 = vmatpush1.msra.mxu0 %v335
          %381 = vmatprep.subr.mxu0 0.0
          %382 = vmatpush2.msra.mxu0 0.0
          %383 = vmatprep.subr.mxu0 0.0
          %384 = vmatpush2.msra.mxu0 0.0
          %385 = vmatprep.subr.mxu0 0.0
          %386 = vmatpush2.msra.mxu0 0.0
          %387 = vmatprep.subr.mxu0 0.0
          %388 = vmatpush2.msra.mxu0 0.0
          %389 = vmatprep.subr.mxu0 0.0
          %390 = vmatpush2.msra.mxu0 0.0
          %391 = vmatprep.subr.mxu0 0.0
          %392 = vmatpush2.msra.mxu0 0.0
          %393 = vmatprep.subr.mxu0 0.0
          %394 = vmatpush2.msra.mxu0 0.0
          %395 = vmatprep.subr.mxu0 0.0
          %396 = vmatpush2.msra.mxu0 0.0
          %397 = vmatprep.subr.mxu0 0.0
          %398 = vmatpush2.msra.mxu0 0.0
          %399 = vmatprep.subr.mxu0 0.0
          %400 = vmatpush2.msra.mxu0 0.0
          %401 = vmatprep.subr.mxu0 0.0
          %402 = vmatpush2.msra.mxu0 0.0
          %403 = vmatprep.subr.mxu0 0.0
          %404 = vmatpush2.msra.mxu0 0.0
          %405 = vmatprep.subr.mxu0 0.0
          %406 = vmatpush2.msra.mxu0 0.0
          %407 = vmatprep.subr.mxu0 0.0
          %408 = vmatpush2.msra.mxu0 0.0
          %409 = vmatprep.subr.mxu0 0.0
          %410 = vmatpush2.msra.mxu0 0.0
          %411 = vmatprep.subr.mxu0 0.0
          %412 = vmatpush2.msra.mxu0 0.0
          %413 = vmatprep.mubr.f32.mxu0 0.0
          %414 = vmatmul.mubr.f32.gmra.mxu0 %v338
          %v415 = vpop.f32.mrf.mxu0
          %v416 = vadd.f32 0.0, %v415
          %v417 = vpop.f32.mrf.mxu0
          %418 = vmatprep.mubr.f32.mxu0 0.0
          %419 = vmatmul.mubr.f32.gmra.mxu0 %v341
          %v420 = vpop.f32.mrf.mxu0
          %v421 = vadd.f32 0.0, %v420
          %v422 = vpop.f32.mrf.mxu0
          %423 = vmatprep.mubr.f32.mxu0 0.0
          %424 = vmatmul.mubr.f32.gmra.mxu0 %v344
          %v425 = vpop.f32.mrf.mxu0
          %v426 = vadd.f32 0.0, %v425
          %v427 = vpop.f32.mrf.mxu0
          %428 = vmatprep.mubr.f32.mxu0 0.0
          %429 = vmatmul.mubr.f32.gmra.mxu0 %v347
          %v430 = vpop.f32.mrf.mxu0
          %v431 = vadd.f32 0.0, %v430
          %v432 = vpop.f32.mrf.mxu0
          %433 = vdwg.mxu0
          %434 = vst [vmem:[#allocation2] sm:$0xff] %v416
          %435 = vst [vmem:[#allocation2 + $0x8] sm:$0xff] %v421
          %436 = vst [vmem:[#allocation2 + $0x10] sm:$0xff] %v426
          %437 = vst [vmem:[#allocation2 + $0x18] sm:$0xff] %v431
        $region48: #{tpu_custom_call.1} parent=35 // pred_fallthru
          _
        %v438 = vld [vmem:[#allocation2] sm:$0xff]
        %v439 = vld [vmem:[#allocation2 + $0x8] sm:$0xff]
        %v440 = vld [vmem:[#allocation2 + $0x10] sm:$0xff]
        %v441 = vld [vmem:[#allocation2 + $0x18] sm:$0xff]
        %v442 = vld [vmem:[%s266] sm:$0xff]
        %v443 = vld [vmem:[%s266 + $0x8] sm:$0xff]
        %v444 = vld [vmem:[%s266 + $0x10] sm:$0xff]
        %v445 = vld [vmem:[%s266 + $0x18] sm:$0xff]
        %v446 = vld [vmem:[%s275] sm:$0xff]
        %v447 = vld [vmem:[%s275 + $0x8] sm:$0xff]
        %v448 = vld [vmem:[%s275 + $0x10] sm:$0xff]
        %v449 = vld [vmem:[%s275 + $0x18] sm:$0xff]
        %v450 = vld [vmem:[%s275 + $0x20] sm:$0xff]
        %v451 = vld [vmem:[%s275 + $0x28] sm:$0xff]
        %v452 = vld [vmem:[%s275 + $0x30] sm:$0xff]
        %v453 = vld [vmem:[%s275 + $0x38] sm:$0xff]
        %v454 = vld [vmem:[%s275 + $0x40] sm:$0xff]
        %v455 = vld [vmem:[%s275 + $0x48] sm:$0xff]
        %v456 = vld [vmem:[%s275 + $0x50] sm:$0xff]
        %v457 = vld [vmem:[%s275 + $0x58] sm:$0xff]
        %v458 = vld [vmem:[%s275 + $0x60] sm:$0xff]
        %v459 = vld [vmem:[%s275 + $0x68] sm:$0xff]
        %v460 = vld [vmem:[%s275 + $0x70] sm:$0xff]
        %v461 = vld [vmem:[%s275 + $0x78] sm:$0xff]
        %462 = vmatprep.subr.mxu0 0.0
        %463 = vmatpush1.msra.mxu0 %v461
        %464 = vmatprep.subr.mxu0 0.0
        %465 = vmatpush1.msra.mxu0 %v460
        %466 = vmatprep.subr.mxu0 0.0
        %467 = vmatpush1.msra.mxu0 %v459
        %468 = vmatprep.subr.mxu0 0.0
        %469 = vmatpush1.msra.mxu0 %v458
        %470 = vmatprep.subr.mxu0 0.0
        %471 = vmatpush1.msra.mxu0 %v457
        %472 = vmatprep.subr.mxu0 0.0
        %473 = vmatpush1.msra.mxu0 %v456
        %474 = vmatprep.subr.mxu0 0.0
        %475 = vmatpush1.msra.mxu0 %v455
        %476 = vmatprep.subr.mxu0 0.0
        %477 = vmatpush1.msra.mxu0 %v454
        %478 = vmatprep.subr.mxu0 0.0
        %479 = vmatpush1.msra.mxu0 %v453
        %480 = vmatprep.subr.mxu0 0.0
        %481 = vmatpush1.msra.mxu0 %v452
        %482 = vmatprep.subr.mxu0 0.0
        %483 = vmatpush1.msra.mxu0 %v451
        %484 = vmatprep.subr.mxu0 0.0
        %485 = vmatpush1.msra.mxu0 %v450
        %486 = vmatprep.subr.mxu0 0.0
        %487 = vmatpush1.msra.mxu0 %v449
        %488 = vmatprep.subr.mxu0 0.0
        %489 = vmatpush1.msra.mxu0 %v448
        %490 = vmatprep.subr.mxu0 0.0
        %491 = vmatpush1.msra.mxu0 %v447
        %492 = vmatprep.subr.mxu0 0.0
        %493 = vmatpush1.msra.mxu0 %v446
        %494 = vmatprep.subr.mxu0 0.0
        %495 = vmatpush2.msra.mxu0 0.0
        %496 = vmatprep.subr.mxu0 0.0
        %497 = vmatpush2.msra.mxu0 0.0
        %498 = vmatprep.subr.mxu0 0.0
        %499 = vmatpush2.msra.mxu0 0.0
        %500 = vmatprep.subr.mxu0 0.0
        %501 = vmatpush2.msra.mxu0 0.0
        %502 = vmatprep.subr.mxu0 0.0
        %503 = vmatpush2.msra.mxu0 0.0
        %504 = vmatprep.subr.mxu0 0.0
        %505 = vmatpush2.msra.mxu0 0.0
        %506 = vmatprep.subr.mxu0 0.0
        %507 = vmatpush2.msra.mxu0 0.0
        %508 = vmatprep.subr.mxu0 0.0
        %509 = vmatpush2.msra.mxu0 0.0
        %510 = vmatprep.subr.mxu0 0.0
        %511 = vmatpush2.msra.mxu0 0.0
        %512 = vmatprep.subr.mxu0 0.0
        %513 = vmatpush2.msra.mxu0 0.0
        %514 = vmatprep.subr.mxu0 0.0
        %515 = vmatpush2.msra.mxu0 0.0
        %516 = vmatprep.subr.mxu0 0.0
        %517 = vmatpush2.msra.mxu0 0.0
        %518 = vmatprep.subr.mxu0 0.0
        %519 = vmatpush2.msra.mxu0 0.0
        %520 = vmatprep.subr.mxu0 0.0
        %521 = vmatpush2.msra.mxu0 0.0
        %522 = vmatprep.subr.mxu0 0.0
        %523 = vmatpush2.msra.mxu0 0.0
        %524 = vmatprep.subr.mxu0 0.0
        %525 = vmatpush2.msra.mxu0 0.0
        %526 = vmatprep.mubr.f32.mxu0 0.0
        %527 = vmatmul.mubr.f32.gmra.mxu0 %v442
        %v528 = vpop.f32.mrf.mxu0
        %v529 = vadd.f32 0.0, %v528
        %v530 = vpop.f32.mrf.mxu0
        %531 = vmatprep.mubr.f32.mxu0 0.0
        %532 = vmatmul.mubr.f32.gmra.mxu0 %v443
        %v533 = vpop.f32.mrf.mxu0
        %v534 = vadd.f32 0.0, %v533
        %v535 = vpop.f32.mrf.mxu0
        %536 = vmatprep.mubr.f32.mxu0 0.0
        %537 = vmatmul.mubr.f32.gmra.mxu0 %v444
        %v538 = vpop.f32.mrf.mxu0
        %v539 = vadd.f32 0.0, %v538
        %v540 = vpop.f32.mrf.mxu0
        %541 = vmatprep.mubr.f32.mxu0 0.0
        %542 = vmatmul.mubr.f32.gmra.mxu0 %v445
        %v543 = vpop.f32.mrf.mxu0
        %v544 = vadd.f32 0.0, %v543
        %v545 = vpop.f32.mrf.mxu0
        %546 = vdwg.mxu0
        %v547 = vadd.f32 %v438, %v529
        %v548 = vadd.f32 %v439, %v534
        %v549 = vadd.f32 %v440, %v539
        %v550 = vadd.f32 %v441, %v544
        %551 = vst [vmem:[#allocation2] sm:$0xff] %v547
        %552 = vst [vmem:[#allocation2 + $0x8] sm:$0xff] %v548
        %553 = vst [vmem:[#allocation2 + $0x10] sm:$0xff] %v549
        %554 = vst [vmem:[#allocation2 + $0x18] sm:$0xff] %v550
        %p555 = scmp.eq.s32.totalorder %s31, 1
        // Predicated region
        $region49: #{tpu_custom_call.1} parent=35 // pred_check
          %p556 = pneg %p555
        $region50: #{tpu_custom_call.1} parent=35 // pred_check_branch
          %558 = sbr.rel (%p556) target = $region52
        $region51: #{tpu_custom_call.1} parent=35 // pred_region
          %v559 = vld [vmem:[#allocation2] sm:$0xff]
          %v560 = vld [vmem:[#allocation2 + $0x8] sm:$0xff]
          %v561 = vld [vmem:[#allocation2 + $0x10] sm:$0xff]
          %v562 = vld [vmem:[#allocation2 + $0x18] sm:$0xff]
          %563 = vst [vmem:[%s313] sm:$0xff] %v559
          %564 = vst [vmem:[%s313 + $0x8] sm:$0xff] %v560
          %565 = vst [vmem:[%s313 + $0x10] sm:$0xff] %v561
          %566 = vst [vmem:[%s313 + $0x18] sm:$0xff] %v562
        $region52: #{tpu_custom_call.1} parent=35 // pred_fallthru
          _
        %s567 = sand.u32 %s161, 1
        %s568 = scalar_lea.sflag [#allocation5], %s567
        %s569 = sand.u32 %s161, 1
        %s570 = smul.addr %s569, 32
        %s571 = scalar_lea.vmem [#allocation8], %s570
        // Predicated region
        $region53: #{tpu_custom_call.1} parent=35 // pred_check
          %p572 = pneg %p171
        $region54: #{tpu_custom_call.1} parent=35 // pred_check_branch
          %574 = sbr.rel (%p572) target = $region56
        $region55: #{tpu_custom_call.1} parent=35 // pred_region
          %s575 = smul.u32 4, %s29
          %s577 = ssub.s32 512, 512
          %578 = vsyncadd %s568, %s577
          %s579 = smul.addr %s575, 2
          %s580 = sadd.s32 %s30, %s579
          %s581 = smul.addr %s580, 128
          %s582 = scalar_lea.hbm %s4, %s581
          %s583 = sshll.u32 %s571, 4
          %s584 = int_to_ptr.vmem [resolvable:$true] %s583
          %589 = dma.vmem_to_hbm [thread:$0]  %s584, 512, %s582, %s568, 128, 256, 8
        $region56: #{tpu_custom_call.1} parent=35 // pred_fallthru
          _
      $region36: #{tpu_custom_call.1} parent=5 // pred_fallthru
        _
      %p590 = scmp.le.s32.totalorder 2, %s19
      // Predicated region
      $region57: #{tpu_custom_call.1} parent=5 // pred_check
        %p591 = pneg %p590
      $region58: #{tpu_custom_call.1} parent=5 // pred_check_branch
        %593 = sbr.rel (%p591) target = $region60
      $region59: #{tpu_custom_call.1} parent=5 // pred_region
        %s594 = ssub.s32 %s19, 2
        // Predicated region
        $region61: #{tpu_custom_call.1} parent=59 // pred_check
          %p595 = pneg %p177
        $region62: #{tpu_custom_call.1} parent=59 // pred_check_branch
          %597 = sbr.rel (%p595) target = $region64
        $region63: #{tpu_custom_call.1} parent=59 // pred_region
          %s598 = sand.u32 %s162, 1
          %s599 = scalar_lea.sflag [#allocation5], %s598
          %s600 = sand.u32 %s162, 1
          %s601 = smul.addr %s600, 32
          %s602 = scalar_lea.vmem [#allocation8], %s601
          %603 = dma.done %s599, 512
        $region64: #{tpu_custom_call.1} parent=59 // pred_fallthru
          _
      $region60: #{tpu_custom_call.1} parent=5 // pred_fallthru
        _
    $region6: #{tpu_custom_call.1} parent=1 // loop_footer
      %s23 = sadd.s32 1, %s19
    $region7: #{tpu_custom_call.1} parent=1 // loop_footer_branch
      %18 = sbr.rel target = $region3
    $region8: #{tpu_custom_call.1} parent=1 // loop_exit
      _
    %604 = vsyncpa [#allocation4], 1
    %s605 = scalar_lea.sflag [#allocation4], 1
    %606 = vsyncpa %s605, 1
    %607 = vsyncpa [#allocation7], 1
    %s608 = scalar_lea.sflag [#allocation7], 1
    %609 = vsyncpa %s608, 1
    %610 = vsyncpa [#allocation5], 1
    %s611 = scalar_lea.sflag [#allocation5], 1
    %612 = vsyncpa %s611, 1

</llo_original>
